<compile_context>
chip_gen: v5e
topology: v5e:2x2
jax: 0.10.0
libtpu: 0.0.40
codegen_flags: <defaults>
</compile_context>

<pallas_src>
import jax
import jax.numpy as jnp
from jax.experimental import pallas as pl
from jax.experimental.pallas import tpu as pltpu


def _swish_kernel(x_ref, o_ref):
    x = x_ref[...]
    if x.dtype in (jnp.float32, jnp.bfloat16):
        # Native-dtype compute (bf16 VPU/EUP paths on v6e/v7x).
        o_ref[...] = x * jax.nn.sigmoid(x)
    else:
        xf = x.astype(jnp.float32)
        o_ref[...] = (xf * jax.nn.sigmoid(xf)).astype(o_ref.dtype)


def _round_up(n: int, m: int) -> int:
    return ((n + m - 1) // m) * m


def _vmem_limit_bytes() -> int:
    """Generation-aware scoped-VMEM limit (leave headroom below physical)."""
    try:
        cap = pltpu.get_tpu_info().vmem_capacity_bytes
    except Exception:  # pragma: no cover - conservative fallback
        cap = 64 << 20
    # v5e/v6e (128 MiB) -> 64 MiB ; v7x (64 MiB) -> 48 MiB.
    return min(64 << 20, (cap * 3) // 4)


def swish(x: jax.Array, *, block_bytes: int = 8 << 20) -> jax.Array:
    """Elementwise x * sigmoid(x) via a Pallas TPU kernel."""
    if not jnp.issubdtype(x.dtype, jnp.floating):
        raise TypeError(f"swish expects a floating dtype, got {x.dtype}")

    orig_shape = x.shape
    total = x.size
    if total == 0:
        return x

    itemsize = jnp.dtype(x.dtype).itemsize
    # Sublane packing multiple: f32 -> 8, bf16 -> 16, fp8/int8 -> 32.
    sub = max(8, 32 // max(1, itemsize))

    vmem_limit = _vmem_limit_bytes()
    # Pipelined footprint ~= 4x block (2 in + 2 out buffers); keep headroom.
    eff_block_bytes = max(1 << 20, min(block_bytes, vmem_limit // 5))

    # ---- Lay the tensor out as a lane-dense (rows, W) slab ----------------
    if total % 128 == 0:
        # Pad-free fast path: W = largest 128-multiple divisor of total, <= 8192.
        n128 = total // 128
        d = 1
        for cand in range(min(64, n128), 0, -1):
            if n128 % cand == 0:
                d = cand
                break
        W = 128 * d
        rows = total // W
        x2d = x.reshape(rows, W)
        pad = 0
    else:
        # Ragged fallback (typically tiny tensors): pad to a multiple of 128.
        W = 1024 if total >= 1024 else _round_up(total, 128)
        padded_total = _round_up(total, W)
        pad = padded_total - total
        flat = jnp.pad(x.reshape(-1), (0, pad))
        rows = padded_total // W
        x2d = flat.reshape(rows, W)

    # ---- Row tiling --------------------------------------------------------
    tm_budget = max(1, eff_block_bytes // (W * itemsize))
    tm = min(rows, tm_budget)
    if tm < rows:
        # Partial-extent blocks must be sublane-aligned for unmasked stores.
        tm = max(sub, (tm // sub) * sub)
        tm = min(tm, rows)

    # Megacore (v7x has 2 TCs): ensure >= 2 grid steps on mid/large tensors.
    if (
        rows >= 2 * sub
        and total * itemsize >= (1 << 20)
        and pl.cdiv(rows, tm) < 2
    ):
        tm = max(sub, ((rows // 2) // sub) * sub)

    grid = (pl.cdiv(rows, tm),)

    out2d = pl.pallas_call(
        _swish_kernel,
        out_shape=jax.ShapeDtypeStruct((rows, W), x.dtype),
        grid_spec=pltpu.PrefetchScalarGridSpec(
            num_scalar_prefetch=0,
            grid=grid,
            in_specs=[pl.BlockSpec((tm, W), lambda i: (i, 0))],
            out_specs=pl.BlockSpec((tm, W), lambda i: (i, 0)),
        ),
        compiler_params=pltpu.CompilerParams(
            dimension_semantics=("parallel",),
            vmem_limit_bytes=vmem_limit,
        ),
    )(x2d)

    if pad > 0:
        return out2d.reshape(-1)[:total].reshape(orig_shape)
    return out2d.reshape(orig_shape)


if __name__ == "__main__":
    key = jax.random.PRNGKey(0)

    # Typical hidden activation: (seq=8, hidden=32), f32 — pad-free path.
    x = jax.random.normal(key, (8, 32), dtype=jnp.float32)
    y = jax.block_until_ready(swish(x))
    y_ref = x * jax.nn.sigmoid(x)
    assert jnp.allclose(y, y_ref, atol=1e-6, rtol=1e-6), "f32 mismatch vs reference"

    # bf16 path, higher-rank input (pad-free, native bf16 compute).
    xb = jax.random.normal(jax.random.PRNGKey(1), (2, 4, 16, 16), dtype=jnp.bfloat16)
    yb = jax.block_until_ready(swish(xb))
    yb_ref = (xb.astype(jnp.float32) * jax.nn.sigmoid(xb.astype(jnp.float32))).astype(
        jnp.bfloat16
    )
    assert jnp.allclose(
        yb.astype(jnp.float32), yb_ref.astype(jnp.float32), atol=2e-2, rtol=2e-2
    ), "bf16 mismatch vs reference"

    # Ragged size (total % 128 != 0) exercises the pad fallback path.
    xr = jax.random.normal(jax.random.PRNGKey(2), (5, 7), dtype=jnp.float32)
    yr = jax.block_until_ready(swish(xr))
    yr_ref = xr * jax.nn.sigmoid(xr)
    assert jnp.allclose(yr, yr_ref, atol=1e-6, rtol=1e-6), "ragged mismatch vs reference"

    print("KERNEL_OK")
</pallas_src>

<mosaic_0001>
module attributes {stable_mosaic.version = 11 : i64} {
  func.func @_swish_kernel(%arg0: i32, %arg1: memref<1x256xf32, #tpu.memory_space<vmem>>, %arg2: memref<1x256xf32, #tpu.memory_space<vmem>>) attributes {dimension_semantics = [#tpu.dimension_semantics<parallel>], iteration_bounds = array<i64: 1>, scalar_prefetch = 0 : i64, scratch_operands = 0 : i64, tpu.core_type = #tpu.core_type<tc>, window_params = [{transform_indices = @transform_0, window_bounds = array<i64: 1, 256>}, {transform_indices = @transform_1, window_bounds = array<i64: 1, 256>}]} {
    %c0 = arith.constant 0 : index
    %c0_0 = arith.constant 0 : index
    %0 = vector.load %arg1[%c0, %c0_0] : memref<1x256xf32, #tpu.memory_space<vmem>>, vector<1x256xf32>
    %1 = arith.negf %0 : vector<1x256xf32>
    %2 = math.exp %1 : vector<1x256xf32>
    %cst = arith.constant 1.000000e+00 : f32
    %3 = vector.broadcast %cst : f32 to vector<1x256xf32>
    %4 = arith.addf %3, %2 : vector<1x256xf32>
    %5 = arith.divf %3, %4 : vector<1x256xf32>
    %6 = arith.mulf %0, %5 : vector<1x256xf32>
    %c0_1 = arith.constant 0 : index
    %c0_2 = arith.constant 0 : index
    %7 = vector.load %arg2[%c0_1, %c0_2] : memref<1x256xf32, #tpu.memory_space<vmem>>, vector<1x256xf32>
    tpu.vector_store %arg2[%c0_1, %c0_2], %6 {strides = array<i32>} : memref<1x256xf32, #tpu.memory_space<vmem>>, vector<1x256xf32>,
    return
  }
  func.func @transform_0(%arg0: i32) -> (i32, i32) {
    %c0_i32 = arith.constant 0 : i32
    %c0_i32_0 = arith.constant 0 : i32
    return %arg0, %c0_i32 : i32, i32
  }
  func.func @transform_1(%arg0: i32) -> (i32, i32) {
    %c0_i32 = arith.constant 0 : i32
    %c0_i32_0 = arith.constant 0 : i32
    return %arg0, %c0_i32 : i32, i32
  }
}

</mosaic_0001>

<llo_original>
// kernel: tpu_custom_call.1
$region0: #{tpu_custom_call.1}
  #allocation0 [shape = 'u32[]', space=smem, size = 0x4, offset = 0x4, fixed_abs, tag = 'smem constant byte address 0x4 - core index']
  #allocation1 [shape = 'u32[72,128]{1,0:T(1,128)}', space=vmem, size = 0x9000, scoped, tag = 'internal scratch']
  %s0 = inlined_call_operand.hbm [shape: f32[1,256], index: 0, kind: input, shape index: {}]
  %s1 = inlined_call_operand.hbm [shape: f32[1,256], index: 1, kind: output, shape index: {}]
  %s2 = sld [smem:[#allocation0]]
  $region18: #{tpu_custom_call.1} parent=0
    _
  %s4 = ssub.s32 1, %s2
  %s5 = scalar_select 0, %s4, %s2
  $region1: #{tpu_custom_call.1} parent=0
    #allocation2 [shape = 'u8[1024]{0}', space=vmem, size = 0x400, scoped, tag = 'input window, operand 0, single buffered']
    #allocation3 [shape = 's32[1]{0}', space=sflag, size = 0x4, scoped, tag = 'scoped memory for tpu_custom_call.1']
    #allocation4 [shape = 's32[1]{0}', space=sflag, size = 0x4, scoped, tag = 'scoped memory for tpu_custom_call.1']
    #allocation5 [shape = 'u8[1024]{0}', space=vmem, size = 0x400, scoped, tag = 'output window, operand 0, single buffered']
    %6 = vsyncpa [#allocation3], 0
    %7 = vsyncpa [#allocation4], 0
    // Predicated region
    $region2: #{tpu_custom_call.1} parent=1 // pred_check
      _
    $region3: #{tpu_custom_call.1} parent=1 // pred_check_branch
      %9 = sbr.rel (0) target = $region5
    $region4: #{tpu_custom_call.1} parent=1 // pred_region
      %11 = vsyncadd [#allocation3], 0
      %s13 = sshll.u32 %s0, 4
      %s14 = int_to_ptr.hbm [resolvable:$true] %s13
      %s15 = sshll.u32 [#allocation2], 4
      %s16 = int_to_ptr.vmem [resolvable:$true] %s15
      %18 = dma.hbm_to_vmem [thread:$0]  %s14, 32, %s16, [#allocation3]
    $region5: #{tpu_custom_call.1} parent=1 // pred_fallthru
      _
    // Predicated region
    $region6: #{tpu_custom_call.1} parent=1 // pred_check
      _
    $region7: #{tpu_custom_call.1} parent=1 // pred_check_branch
      %20 = sbr.rel (0) target = $region9
    $region8: #{tpu_custom_call.1} parent=1 // pred_region
      %22 = dma.done [#allocation3], 32
    $region9: #{tpu_custom_call.1} parent=1 // pred_fallthru
      _
    %v23 = vld [vmem:[#allocation2] sm:$0x3]
    %v24 = vxor.u32 %v23, 2147483648
    %v25 = vmul.f32 %v24, 1.442695
    %v26 = vpow.pop %v25
    %v27 = vadd.f32 %v26, 1.0
    %v28 = vrcp.pop %v27
    %v29 = vmul.f32 %v27, %v28
    %v30 = vsub.f32 1.0, %v29
    %v31 = vmul.f32 %v28, %v30
    %v32 = vadd.f32 %v28, %v31
    %vm33 = vweird.f32 %v27
    %vm34 = vweird.f32 %v28
    %vm35 = vmor %vm33, %vm34
    %v36 = vsel %vm35, %v28, %v32
    %v37 = vand.u32 2147483647, %v27
    %vm38 = vcmp.eq.f32.partialorder %v37, 8.507059e+37
    %v39 = vand.u32 %v27, 2147483648
    %v40 = vor.u32 1.1754944e-38, %v39
    %v41 = vsel %vm38, %v40, %v36
    %v42 = vmul.f32 1.0, %v41
    %v43 = vmul.f32 %v23, %v42
    %v44 = vlaneseq
    %vm45 = vcmp.ge.s32.totalorder %v44, 0
    %vm46 = vcmp.lt.s32.totalorder %v44, 256
    %vm47 = vmand %vm45, %vm46
    %48 = vst.msk [vmem:[#allocation5] sm:$0x3] %vm47, %v43
    // Predicated region
    $region10: #{tpu_custom_call.1} parent=1 // pred_check
      _
    $region11: #{tpu_custom_call.1} parent=1 // pred_check_branch
      %50 = sbr.rel (0) target = $region13
    $region12: #{tpu_custom_call.1} parent=1 // pred_region
      %52 = vsyncadd [#allocation4], 0
      %s54 = sshll.u32 [#allocation5], 4
      %s55 = int_to_ptr.vmem [resolvable:$true] %s54
      %s56 = sshll.u32 %s1, 4
      %s57 = int_to_ptr.hbm [resolvable:$true] %s56
      %59 = dma.vmem_to_hbm [thread:$0]  %s55, 32, %s57, [#allocation4]
    $region13: #{tpu_custom_call.1} parent=1 // pred_fallthru
      _
    // Predicated region
    $region14: #{tpu_custom_call.1} parent=1 // pred_check
      _
    $region15: #{tpu_custom_call.1} parent=1 // pred_check_branch
      %61 = sbr.rel (0) target = $region17
    $region16: #{tpu_custom_call.1} parent=1 // pred_region
      %63 = dma.done [#allocation4], 32
    $region17: #{tpu_custom_call.1} parent=1 // pred_fallthru
      _
    %64 = vsyncpa [#allocation3], 1
    %65 = vsyncpa [#allocation4], 1

</llo_original>
